<compile_context>
chip_gen: v7x
topology: tpu7x:2x2x1
jax: 0.10.0
libtpu: 0.0.40
codegen_flags: <defaults>
</compile_context>

<pallas_src>
import jax
import jax.numpy as jnp
from jax.experimental import pallas as pl
from jax.experimental.pallas import tpu as pltpu


# --------------------------------------------------------------------------
# Fused Pallas kernel: im2col-conv (3x3, stand-in encoder) + ReLU + det head
# --------------------------------------------------------------------------
def _fused_conv_head_kernel(p_ref, we_ref, be_ref, wh_ref, bh_ref, o_ref):
    """One row-tile of the whole network's dense math.

    p_ref : (V, tm, Kp)      bf16   im2col patches per view (K padded to 128)
    we_ref: (Kp, 128)        bf16   packed 3x3 encoder weight
    be_ref: (1, 128)         f32    encoder bias
    wh_ref: (V, 128, Nh)     bf16   det-head weight, split per view
    bh_ref: (1, Nh)          f32    det-head bias
    o_ref : (tm, Nh)         f32    raw detection-head outputs (lane-dense)
    """
    n_views = p_ref.shape[0]
    tm = o_ref.shape[0]
    nh = o_ref.shape[1]

    acc = jnp.zeros((tm, nh), jnp.float32)
    for v in range(n_views):  # static unroll over views
        # encoder: one big matmul instead of 9 per-tap K=Cin matmuls
        feat = jnp.dot(p_ref[v], we_ref[...],
                       preferred_element_type=jnp.float32)
        feat = jnp.maximum(feat + be_ref[...], 0.0).astype(jnp.bfloat16)
        # det head (1x1 conv == matmul), fused so features never hit HBM
        acc = acc + jnp.dot(feat, wh_ref[v],
                            preferred_element_type=jnp.float32)
    o_ref[...] = acc + bh_ref[...]


def fused_conv_head(patches, w_enc, b_enc, w_head, b_head, *, tm):
    """patches: (V, rows_pad, Kp) bf16 -> raw head outputs (rows_pad, Nh) f32."""
    n_views, rows_pad, kp = patches.shape
    cf = w_enc.shape[1]
    nh = w_head.shape[-1]
    assert rows_pad % tm == 0

    return pl.pallas_call(
        _fused_conv_head_kernel,
        out_shape=jax.ShapeDtypeStruct((rows_pad, nh), jnp.float32),
        grid_spec=pltpu.PrefetchScalarGridSpec(
            num_scalar_prefetch=0,
            grid=(rows_pad // tm,),
            in_specs=[
                pl.BlockSpec((n_views, tm, kp), lambda i: (0, i, 0)),
                pl.BlockSpec((kp, cf), lambda i: (0, 0)),
                pl.BlockSpec((1, cf), lambda i: (0, 0)),
                pl.BlockSpec((n_views, cf, nh), lambda i: (0, 0, 0)),
                pl.BlockSpec((1, nh), lambda i: (0, 0)),
            ],
            out_specs=pl.BlockSpec((tm, nh), lambda i: (i, 0)),
        ),
        compiler_params=pltpu.CompilerParams(
            dimension_semantics=("parallel",)),
    )(patches, w_enc, b_enc, w_head, b_head)


# --------------------------------------------------------------------------
# PoseEstimator (forward pass only)
# --------------------------------------------------------------------------
class PoseEstimatorPallas:
    def __init__(self, sensory_channels, encoder_type='resnet', n_views=1,
                 fusion_type=None, obj_ids=(), anchors=3, seed=0):
        assert fusion_type is None, "transformer fusion not implemented"
        self.out_dim = 128
        self.ngf = 16
        self.obj_ids = sorted(list(obj_ids))
        self.obj_id_to_class_idx = {o: i for i, o in enumerate(self.obj_ids)}
        self.class_idx_to_obj_id = {i: o for o, i in self.obj_id_to_class_idx.items()}
        self.num_classes = len(self.obj_ids)
        self.anchors = anchors
        self.n_views = n_views
        self.modality = list(sensory_channels.keys())[0]
        self.cin = sensory_channels[self.modality]

        # im2col contraction depth: 9*Cin, zero-padded up to a multiple of 128
        # so the MXU contraction rows are fully fed.
        self.k_raw = 9 * self.cin
        self.kp = max(128, ((self.k_raw + 127) // 128) * 128)

        key = jax.random.PRNGKey(seed)
        k1, k2, k3, k4 = jax.random.split(key, 4)

        # ---- encoder stand-in (ResNetFeatureEncoder internals unspecified):
        # 3x3 conv (Cin -> out_dim) + ReLU, packed for im2col (9*Cin -> out_dim)
        w_enc = 0.1 * jax.random.normal(
            k1, (3, 3, self.cin, self.out_dim), jnp.float32)
        w_enc_packed = w_enc.reshape(self.k_raw, self.out_dim)
        self.w_enc = (jnp.zeros((self.kp, self.out_dim), jnp.float32)
                      .at[:self.k_raw, :].set(w_enc_packed)).astype(jnp.bfloat16)
        self.b_enc = (0.01 * jax.random.normal(
            k2, (1, self.out_dim), jnp.float32)).astype(jnp.float32)

        # ---- GridObjectDetector: 1x1 conv  (out_dim*n_views) -> head_out
        # head_out = anchors * (4 quat + 3 trans + 1 conf + num_classes)
        in_dim = self.out_dim * n_views
        self.head_out = anchors * (8 + self.num_classes)
        w_head = 0.1 * jax.random.normal(
            k3, (in_dim, self.head_out), jnp.float32)
        # split per view so the fused kernel can accumulate view contributions
        self.w_head = w_head.reshape(
            n_views, self.out_dim, self.head_out).astype(jnp.bfloat16)
        self.b_head = (0.01 * jax.random.normal(
            k4, (1, self.head_out), jnp.float32)).astype(jnp.float32)

        self.obj_ids_arr = jnp.array(self.obj_ids, jnp.int32)

    # ---------------- im2col glue (plain JAX) ----------------
    def _im2col(self, x_nchw):
        # TODO(synk): reading NCHW directly in-kernel (avoiding this XLA
        # transpose/pack pass) would save one HBM pass at large resolutions.
        x = jnp.transpose(x_nchw, (0, 2, 3, 1))               # NHWC
        B, H, W, C = x.shape
        xp = jnp.pad(x, ((0, 0), (1, 1), (1, 1), (0, 0)))
        taps = [xp[:, dh:dh + H, dw:dw + W, :]
                for dh in range(3) for dw in range(3)]
        p = jnp.concatenate(taps, axis=-1).reshape(B * H * W, self.k_raw)
        if self.kp > self.k_raw:
            p = jnp.pad(p, ((0, 0), (0, self.kp - self.k_raw)))
        return p.astype(jnp.bfloat16)                          # (rows, Kp)

    # ---------------- det head activations (glue) ----------------
    def apply_activations(self, raw):
        # raw: [B, H, W, A, 8 + C] == [quat(4) | trans(3) | conf(1) | class(C)]
        # TODO(synk): these could be fused into the kernel epilogue; they act
        # on lane-sparse 12-wide groups, so kept in XLA for clarity here.
        quat = raw[..., 0:4]
        quat = quat / (jnp.linalg.norm(quat, axis=-1, keepdims=True) + 1e-8)
        trans = raw[..., 4:7]
        conf = jax.nn.sigmoid(raw[..., 7])
        class_scores = jax.nn.softmax(raw[..., 8:], axis=-1)
        return {'quat': quat, 'trans': trans, 'conf': conf,
                'class_scores': class_scores}

    # ---------------- top-k decode (glue) ----------------
    def decode_poses(self, outputs, top_k=100):
        quat = outputs['quat']
        B, H, W, A, _ = quat.shape
        N = H * W * A
        conf = outputs['conf'].reshape(B, N)
        cls = outputs['class_scores'].reshape(B, N, self.num_classes)
        cls_best = jnp.max(cls, axis=-1)
        cls_idx = jnp.argmax(cls, axis=-1)
        score = conf * cls_best
        k = min(top_k, N)
        top_scores, top_idx = jax.lax.top_k(score, k)          # [B, k]
        gather = lambda a: jnp.take_along_axis(
            a.reshape(B, N, -1), top_idx[..., None], axis=1)
        det_quat = gather(quat)                                # [B, k, 4]
        det_trans = gather(outputs['trans'])                   # [B, k, 3]
        det_cls = jnp.take_along_axis(cls_idx, top_idx, axis=1)
        det_obj_ids = self.obj_ids_arr[det_cls]                # [B, k]
        det_conf = jnp.take_along_axis(conf, top_idx, axis=1)
        return {'scores': top_scores, 'quat': det_quat, 'trans': det_trans,
                'obj_ids': det_obj_ids, 'conf': det_conf}

    # ---------------- forward ----------------
    def forward(self, x_dict_views, K_list, top_k=100):
        # K_list is unused when fusion_module is None (matches the reference).
        assert len(x_dict_views) == self.n_views
        x0 = x_dict_views[0][self.modality]
        B, _, H, W = x0.shape
        rows = B * H * W

        patches = jnp.stack(
            [self._im2col(xd[self.modality]) for xd in x_dict_views], axis=0)

        # fixed row tile (512 preferred); pad rows up to a tile multiple —
        # never a whole-matrix single block.
        tm = min(512, ((rows + 127) // 128) * 128)
        rows_pad = ((rows + tm - 1) // tm) * tm
        if rows_pad != rows:
            patches = jnp.pad(patches, ((0, 0), (0, rows_pad - rows), (0, 0)))

        raw_flat = fused_conv_head(patches, self.w_enc, self.b_enc,
                                   self.w_head, self.b_head, tm=tm)
        raw_outputs = raw_flat[:rows].reshape(
            B, H, W, self.anchors, 8 + self.num_classes)

        outputs = self.apply_activations(raw_outputs)
        detections = self.decode_poses(outputs, top_k=top_k)
        return detections, raw_outputs

    # TODO(synk): compute_pose_loss (Hungarian matching via scipy
    # linear_sum_assignment) is host-side / data-dependent and is not a
    # kernel; not implemented here.


# --------------------------------------------------------------------------
if __name__ == "__main__":
    key = jax.random.PRNGKey(0)
    B, C, Hs, Ws = 2, 4, 16, 16
    est = PoseEstimatorPallas(sensory_channels={'rgb': C},
                              encoder_type='resnet',
                              n_views=1, fusion_type=None,
                              obj_ids={2, 5, 8, 11}, anchors=3, seed=0)

    x = jax.random.normal(key, (B, C, Hs, Ws), jnp.float32)   # NCHW, like PyTorch
    K_list = [jnp.eye(3, dtype=jnp.float32)]
    x_dict_views = [{'rgb': x}]

    detections, raw_outputs = est.forward(x_dict_views, K_list, top_k=8)

    jax.block_until_ready(raw_outputs)
    jax.block_until_ready(detections['scores'])
    jax.block_until_ready(detections['quat'])
    jax.block_until_ready(detections['trans'])
    jax.block_until_ready(detections['obj_ids'])

    assert raw_outputs.shape == (B, Hs, Ws, 3, 8 + 4)
    assert detections['quat'].shape == (B, 8, 4)
    assert detections['trans'].shape == (B, 8, 3)
    print("KERNEL_OK")
</pallas_src>

<mosaic_0001>
module attributes {stable_mosaic.version = 11 : i64} {
  func.func @_fused_conv_head_kernel(%arg0: i32, %arg1: memref<1x512x128xbf16, #tpu.memory_space<vmem>>, %arg2: memref<128x128xbf16, #tpu.memory_space<vmem>>, %arg3: memref<1x128xf32, #tpu.memory_space<vmem>>, %arg4: memref<1x128x36xbf16, #tpu.memory_space<vmem>>, %arg5: memref<1x36xf32, #tpu.memory_space<vmem>>, %arg6: memref<512x36xf32, #tpu.memory_space<vmem>>) attributes {dimension_semantics = [#tpu.dimension_semantics<parallel>], iteration_bounds = array<i64: 1>, scalar_prefetch = 0 : i64, scratch_operands = 0 : i64, tpu.core_type = #tpu.core_type<tc>, window_params = [{transform_indices = @transform_0, window_bounds = array<i64: 1, 512, 128>}, {pipeline_mode = #tpu.pipeline_mode<synchronous>, transform_indices = @transform_1, window_bounds = array<i64: 128, 128>}, {pipeline_mode = #tpu.pipeline_mode<synchronous>, transform_indices = @transform_2, window_bounds = array<i64: 1, 128>}, {pipeline_mode = #tpu.pipeline_mode<synchronous>, transform_indices = @transform_3, window_bounds = array<i64: 1, 128, 36>}, {pipeline_mode = #tpu.pipeline_mode<synchronous>, transform_indices = @transform_4, window_bounds = array<i64: 1, 36>}, {transform_indices = @transform_5, window_bounds = array<i64: 512, 36>}]} {
    %cst = arith.constant 0.000000e+00 : f32
    %0 = vector.broadcast %cst : f32 to vector<512x36xf32>
    %c0 = arith.constant 0 : index
    %c0_0 = arith.constant 0 : index
    %c0_1 = arith.constant 0 : index
    %1 = vector.load %arg1[%c0, %c0_0, %c0_1] : memref<1x512x128xbf16, #tpu.memory_space<vmem>>, vector<1x512x128xbf16>
    %2 = vector.shape_cast %1 : vector<1x512x128xbf16> to vector<512x128xbf16>
    %c0_2 = arith.constant 0 : index
    %c0_3 = arith.constant 0 : index
    %3 = vector.load %arg2[%c0_2, %c0_3] : memref<128x128xbf16, #tpu.memory_space<vmem>>, vector<128x128xbf16>
    %cst_4 = arith.constant dense<0.000000e+00> : vector<512x128xf32>
    %4 = tpu.matmul %2, %3, %cst_4 {dimension_numbers = #tpu.dot_dimension_numbers<[1], [0], [0], [1], [0, 0, 1, 1], [], []>} : vector<512x128xbf16>, vector<128x128xbf16>, vector<512x128xf32> -> vector<512x128xf32>
    %c0_5 = arith.constant 0 : index
    %c0_6 = arith.constant 0 : index
    %5 = vector.load %arg3[%c0_5, %c0_6] : memref<1x128xf32, #tpu.memory_space<vmem>>, vector<1x128xf32>
    %6 = vector.broadcast %5 : vector<1x128xf32> to vector<512x128xf32>
    %7 = arith.addf %4, %6 : vector<512x128xf32>
    %cst_7 = arith.constant 0.000000e+00 : f32
    %8 = vector.broadcast %cst_7 : f32 to vector<512x128xf32>
    %9 = arith.maximumf %7, %8 : vector<512x128xf32>
    %10 = arith.truncf %9 : vector<512x128xf32> to vector<512x128xbf16>
    %c0_8 = arith.constant 0 : index
    %c0_9 = arith.constant 0 : index
    %c0_10 = arith.constant 0 : index
    %11 = vector.load %arg4[%c0_8, %c0_9, %c0_10] : memref<1x128x36xbf16, #tpu.memory_space<vmem>>, vector<1x128x36xbf16>
    %12 = vector.shape_cast %11 : vector<1x128x36xbf16> to vector<128x36xbf16>
    %cst_11 = arith.constant dense<0.000000e+00> : vector<512x36xf32>
    %13 = tpu.matmul %10, %12, %cst_11 {dimension_numbers = #tpu.dot_dimension_numbers<[1], [0], [0], [1], [0, 0, 1, 1], [], []>} : vector<512x128xbf16>, vector<128x36xbf16>, vector<512x36xf32> -> vector<512x36xf32>
    %14 = arith.addf %0, %13 : vector<512x36xf32>
    %c0_12 = arith.constant 0 : index
    %c0_13 = arith.constant 0 : index
    %15 = vector.load %arg5[%c0_12, %c0_13] : memref<1x36xf32, #tpu.memory_space<vmem>>, vector<1x36xf32>
    %16 = vector.broadcast %15 : vector<1x36xf32> to vector<512x36xf32>
    %17 = arith.addf %14, %16 : vector<512x36xf32>
    %c0_14 = arith.constant 0 : index
    %c0_15 = arith.constant 0 : index
    %18 = vector.load %arg6[%c0_14, %c0_15] : memref<512x36xf32, #tpu.memory_space<vmem>>, vector<512x36xf32>
    tpu.vector_store %arg6[%c0_14, %c0_15], %17 {strides = array<i32>} : memref<512x36xf32, #tpu.memory_space<vmem>>, vector<512x36xf32>,
    return
  }
  func.func @transform_0(%arg0: i32) -> (i32, i32, i32) {
    %c0_i32 = arith.constant 0 : i32
    %c0_i32_0 = arith.constant 0 : i32
    %c0_i32_1 = arith.constant 0 : i32
    return %c0_i32, %arg0, %c0_i32_0 : i32, i32, i32
  }
  func.func @transform_1(%arg0: i32) -> (i32, i32) {
    %c0_i32 = arith.constant 0 : i32
    %c0_i32_0 = arith.constant 0 : i32
    %c0_i32_1 = arith.constant 0 : i32
    return %c0_i32, %c0_i32_0 : i32, i32
  }
  func.func @transform_2(%arg0: i32) -> (i32, i32) {
    %c0_i32 = arith.constant 0 : i32
    %c0_i32_0 = arith.constant 0 : i32
    %c0_i32_1 = arith.constant 0 : i32
    return %c0_i32, %c0_i32_0 : i32, i32
  }
  func.func @transform_3(%arg0: i32) -> (i32, i32, i32) {
    %c0_i32 = arith.constant 0 : i32
    %c0_i32_0 = arith.constant 0 : i32
    %c0_i32_1 = arith.constant 0 : i32
    %c0_i32_2 = arith.constant 0 : i32
    return %c0_i32, %c0_i32_0, %c0_i32_1 : i32, i32, i32
  }
  func.func @transform_4(%arg0: i32) -> (i32, i32) {
    %c0_i32 = arith.constant 0 : i32
    %c0_i32_0 = arith.constant 0 : i32
    %c0_i32_1 = arith.constant 0 : i32
    return %c0_i32, %c0_i32_0 : i32, i32
  }
  func.func @transform_5(%arg0: i32) -> (i32, i32) {
    %c0_i32 = arith.constant 0 : i32
    %c0_i32_0 = arith.constant 0 : i32
    return %arg0, %c0_i32 : i32, i32
  }
}

</mosaic_0001>

<llo_original>
// kernel: tpu_custom_call.1
$region0: #{tpu_custom_call.1}
  #allocation0 [shape = 'u32[]', space=smem, size = 0x4, offset = 0x4, fixed_abs, tag = 'smem constant byte address 0x4 - core index']
  #allocation1 [shape = 'u32[144,128]{1,0:T(1,128)}', space=vmem, size = 0x12000, scoped, tag = 'internal scratch']
  %s0 = inlined_call_operand.hbm [shape: bf16[1,512,128], index: 0, kind: input, shape index: {}]
  %s1 = inlined_call_operand.vmem [shape: bf16[128,128], index: 1, kind: input, shape index: {}]
  %s2 = inlined_call_operand.vmem [shape: f32[1,128], index: 2, kind: input, shape index: {}]
  %s3 = inlined_call_operand.vmem [shape: bf16[1,128,36], index: 3, kind: input, shape index: {}]
  %s4 = inlined_call_operand.vmem [shape: f32[1,36], index: 4, kind: input, shape index: {}]
  %s5 = inlined_call_operand.vmem [shape: f32[512,36], index: 5, kind: output, shape index: {}]
  %s6 = sld [smem:[#allocation0]]
  $region34: #{tpu_custom_call.1} parent=0
    _
  %s8 = ssub.s32 1, %s6
  %s9 = scalar_select 0, %s8, %s6
  $region1: #{tpu_custom_call.1} parent=0
    #allocation2 [shape = 'u8[131072]{0}', space=vmem, size = 0x20000, scoped, tag = 'input window, operand 0, single buffered']
    #allocation3 [shape = 's32[1]{0}', space=sflag, size = 0x4, scoped, tag = 'scoped memory for tpu_custom_call.1']
    %10 = vsyncpa [#allocation3], 0
    // Predicated region
    $region2: #{tpu_custom_call.1} parent=1 // pred_check
      _
    $region3: #{tpu_custom_call.1} parent=1 // pred_check_branch
      %12 = sbr.rel (0) target = $region5
    $region4: #{tpu_custom_call.1} parent=1 // pred_region
      %s14 = ssub.s32 4096, 4096
      %15 = vsyncadd [#allocation3], %s14
      %s16 = sshll.u32 [#allocation2], 4
      %s17 = int_to_ptr.vmem [resolvable:$true] %s16
      %22 = dma.hbm_to_vmem [thread:$0]  %s0, 4096, %s17, [#allocation3], 64, 64, 4
    $region5: #{tpu_custom_call.1} parent=1 // pred_fallthru
      _
    // Predicated region
    $region6: #{tpu_custom_call.1} parent=1 // pred_check
      _
    $region7: #{tpu_custom_call.1} parent=1 // pred_check_branch
      %24 = sbr.rel (0) target = $region9
    $region8: #{tpu_custom_call.1} parent=1 // pred_region
      _
    $region9: #{tpu_custom_call.1} parent=1 // pred_fallthru
      _
    // Predicated region
    $region10: #{tpu_custom_call.1} parent=1 // pred_check
      _
    $region11: #{tpu_custom_call.1} parent=1 // pred_check_branch
      %26 = sbr.rel (0) target = $region13
    $region12: #{tpu_custom_call.1} parent=1 // pred_region
      _
    $region13: #{tpu_custom_call.1} parent=1 // pred_fallthru
      _
    // Predicated region
    $region14: #{tpu_custom_call.1} parent=1 // pred_check
      _
    $region15: #{tpu_custom_call.1} parent=1 // pred_check_branch
      %28 = sbr.rel (0) target = $region17
    $region16: #{tpu_custom_call.1} parent=1 // pred_region
      _
    $region17: #{tpu_custom_call.1} parent=1 // pred_fallthru
      _
    // Predicated region
    $region18: #{tpu_custom_call.1} parent=1 // pred_check
      _
    $region19: #{tpu_custom_call.1} parent=1 // pred_check_branch
      %30 = sbr.rel (0) target = $region21
    $region20: #{tpu_custom_call.1} parent=1 // pred_region
      _
    $region21: #{tpu_custom_call.1} parent=1 // pred_fallthru
      _
    // Predicated region
    $region22: #{tpu_custom_call.1} parent=1 // pred_check
      _
    $region23: #{tpu_custom_call.1} parent=1 // pred_check_branch
      %32 = sbr.rel (0) target = $region25
    $region24: #{tpu_custom_call.1} parent=1 // pred_region
      %33 = dma.done [#allocation3], 4096
    $region25: #{tpu_custom_call.1} parent=1 // pred_fallthru
      _
    %v35 = vld [vmem:[#allocation2] sm:$0xf]
    %v36 = vld [vmem:[#allocation2 + $0x4] sm:$0xf]
    %v37 = vld [vmem:[#allocation2 + $0x8] sm:$0xf]
    %v38 = vld [vmem:[#allocation2 + $0xc] sm:$0xf]
    %v39 = vld [vmem:[#allocation2 + $0x10] sm:$0xf]
    %v40 = vld [vmem:[#allocation2 + $0x14] sm:$0xf]
    %v41 = vld [vmem:[#allocation2 + $0x18] sm:$0xf]
    %v42 = vld [vmem:[#allocation2 + $0x1c] sm:$0xf]
    %v43 = vld [vmem:[#allocation2 + $0x20] sm:$0xf]
    %v44 = vld [vmem:[#allocation2 + $0x24] sm:$0xf]
    %v45 = vld [vmem:[#allocation2 + $0x28] sm:$0xf]
    %v46 = vld [vmem:[#allocation2 + $0x2c] sm:$0xf]
    %v47 = vld [vmem:[#allocation2 + $0x30] sm:$0xf]
    %v48 = vld [vmem:[#allocation2 + $0x34] sm:$0xf]
    %v49 = vld [vmem:[#allocation2 + $0x38] sm:$0xf]
    %v50 = vld [vmem:[#allocation2 + $0x3c] sm:$0xf]
    %v51 = vld [vmem:[#allocation2 + $0x40] sm:$0xf]
    %v52 = vld [vmem:[#allocation2 + $0x44] sm:$0xf]
    %v53 = vld [vmem:[#allocation2 + $0x48] sm:$0xf]
    %v54 = vld [vmem:[#allocation2 + $0x4c] sm:$0xf]
    %v55 = vld [vmem:[#allocation2 + $0x50] sm:$0xf]
    %v56 = vld [vmem:[#allocation2 + $0x54] sm:$0xf]
    %v57 = vld [vmem:[#allocation2 + $0x58] sm:$0xf]
    %v58 = vld [vmem:[#allocation2 + $0x5c] sm:$0xf]
    %v59 = vld [vmem:[#allocation2 + $0x60] sm:$0xf]
    %v60 = vld [vmem:[#allocation2 + $0x64] sm:$0xf]
    %v61 = vld [vmem:[#allocation2 + $0x68] sm:$0xf]
    %v62 = vld [vmem:[#allocation2 + $0x6c] sm:$0xf]
    %v63 = vld [vmem:[#allocation2 + $0x70] sm:$0xf]
    %v64 = vld [vmem:[#allocation2 + $0x74] sm:$0xf]
    %v65 = vld [vmem:[#allocation2 + $0x78] sm:$0xf]
    %v66 = vld [vmem:[#allocation2 + $0x7c] sm:$0xf]
    %v67 = vld [vmem:[#allocation2 + $0x80] sm:$0xf]
    %v68 = vld [vmem:[#allocation2 + $0x84] sm:$0xf]
    %v69 = vld [vmem:[#allocation2 + $0x88] sm:$0xf]
    %v70 = vld [vmem:[#allocation2 + $0x8c] sm:$0xf]
    %v71 = vld [vmem:[#allocation2 + $0x90] sm:$0xf]
    %v72 = vld [vmem:[#allocation2 + $0x94] sm:$0xf]
    %v73 = vld [vmem:[#allocation2 + $0x98] sm:$0xf]
    %v74 = vld [vmem:[#allocation2 + $0x9c] sm:$0xf]
    %v75 = vld [vmem:[#allocation2 + $0xa0] sm:$0xf]
    %v76 = vld [vmem:[#allocation2 + $0xa4] sm:$0xf]
    %v77 = vld [vmem:[#allocation2 + $0xa8] sm:$0xf]
    %v78 = vld [vmem:[#allocation2 + $0xac] sm:$0xf]
    %v79 = vld [vmem:[#allocation2 + $0xb0] sm:$0xf]
    %v80 = vld [vmem:[#allocation2 + $0xb4] sm:$0xf]
    %v81 = vld [vmem:[#allocation2 + $0xb8] sm:$0xf]
    %v82 = vld [vmem:[#allocation2 + $0xbc] sm:$0xf]
    %v83 = vld [vmem:[#allocation2 + $0xc0] sm:$0xf]
    %v84 = vld [vmem:[#allocation2 + $0xc4] sm:$0xf]
    %v85 = vld [vmem:[#allocation2 + $0xc8] sm:$0xf]
    %v86 = vld [vmem:[#allocation2 + $0xcc] sm:$0xf]
    %v87 = vld [vmem:[#allocation2 + $0xd0] sm:$0xf]
    %v88 = vld [vmem:[#allocation2 + $0xd4] sm:$0xf]
    %v89 = vld [vmem:[#allocation2 + $0xd8] sm:$0xf]
    %v90 = vld [vmem:[#allocation2 + $0xdc] sm:$0xf]
    %v91 = vld [vmem:[#allocation2 + $0xe0] sm:$0xf]
    %v92 = vld [vmem:[#allocation2 + $0xe4] sm:$0xf]
    %v93 = vld [vmem:[#allocation2 + $0xe8] sm:$0xf]
    %v94 = vld [vmem:[#allocation2 + $0xec] sm:$0xf]
    %v95 = vld [vmem:[#allocation2 + $0xf0] sm:$0xf]
    %v96 = vld [vmem:[#allocation2 + $0xf4] sm:$0xf]
    %v97 = vld [vmem:[#allocation2 + $0xf8] sm:$0xf]
    %v98 = vld [vmem:[#allocation2 + $0xfc] sm:$0xf]
    %v99 = vld [vmem:[%s1] sm:$0xf]
    %v100 = vld [vmem:[%s1 + $0x4] sm:$0xf]
    %v101 = vld [vmem:[%s1 + $0x8] sm:$0xf]
    %v102 = vld [vmem:[%s1 + $0xc] sm:$0xf]
    %v103 = vld [vmem:[%s1 + $0x10] sm:$0xf]
    %v104 = vld [vmem:[%s1 + $0x14] sm:$0xf]
    %v105 = vld [vmem:[%s1 + $0x18] sm:$0xf]
    %v106 = vld [vmem:[%s1 + $0x1c] sm:$0xf]
    %v107 = vld [vmem:[%s1 + $0x20] sm:$0xf]
    %v108 = vld [vmem:[%s1 + $0x24] sm:$0xf]
    %v109 = vld [vmem:[%s1 + $0x28] sm:$0xf]
    %v110 = vld [vmem:[%s1 + $0x2c] sm:$0xf]
    %v111 = vld [vmem:[%s1 + $0x30] sm:$0xf]
    %v112 = vld [vmem:[%s1 + $0x34] sm:$0xf]
    %v113 = vld [vmem:[%s1 + $0x38] sm:$0xf]
    %v114 = vld [vmem:[%s1 + $0x3c] sm:$0xf]
    %v115 = vld [vmem:[%s2] sm:$0x1]
    %v117 = vlaneseq
    %v118 = vshrl.u32 %v117, 7
    %v119 = vsub.s32 0, %v118
    %v120 = vrot.slane %v115, %v119
    %v186 = vunpack.c.l.b16 %v35
    %v187 = vunpack.c.l.b16 %v36
    %v188 = vunpack.c.l.b16 %v37
    %v189 = vunpack.c.l.b16 %v38
    %v190 = vunpack.c.l.b16 %v39
    %v191 = vunpack.c.l.b16 %v40
    %v192 = vunpack.c.l.b16 %v41
    %v193 = vunpack.c.l.b16 %v42
    %v194 = vunpack.c.l.b16 %v43
    %v195 = vunpack.c.l.b16 %v44
    %v196 = vunpack.c.l.b16 %v45
    %v197 = vunpack.c.l.b16 %v46
    %v198 = vunpack.c.l.b16 %v47
    %v199 = vunpack.c.l.b16 %v48
    %v200 = vunpack.c.l.b16 %v49
    %v201 = vunpack.c.l.b16 %v50
    %v202 = vunpack.c.l.b16 %v51
    %v203 = vunpack.c.l.b16 %v52
    %v204 = vunpack.c.l.b16 %v53
    %v205 = vunpack.c.l.b16 %v54
    %v206 = vunpack.c.l.b16 %v55
    %v207 = vunpack.c.l.b16 %v56
    %v208 = vunpack.c.l.b16 %v57
    %v209 = vunpack.c.l.b16 %v58
    %v210 = vunpack.c.l.b16 %v59
    %v211 = vunpack.c.l.b16 %v60
    %v212 = vunpack.c.l.b16 %v61
    %v213 = vunpack.c.l.b16 %v62
    %v214 = vunpack.c.l.b16 %v63
    %v215 = vunpack.c.l.b16 %v64
    %v216 = vunpack.c.l.b16 %v65
    %v217 = vunpack.c.l.b16 %v66
    %v218 = vunpack.c.l.b16 %v67
    %v219 = vunpack.c.l.b16 %v68
    %v220 = vunpack.c.l.b16 %v69
    %v221 = vunpack.c.l.b16 %v70
    %v222 = vunpack.c.l.b16 %v71
    %v223 = vunpack.c.l.b16 %v72
    %v224 = vunpack.c.l.b16 %v73
    %v225 = vunpack.c.l.b16 %v74
    %v226 = vunpack.c.l.b16 %v75
    %v227 = vunpack.c.l.b16 %v76
    %v228 = vunpack.c.l.b16 %v77
    %v229 = vunpack.c.l.b16 %v78
    %v230 = vunpack.c.l.b16 %v79
    %v231 = vunpack.c.l.b16 %v80
    %v232 = vunpack.c.l.b16 %v81
    %v233 = vunpack.c.l.b16 %v82
    %v234 = vunpack.c.l.b16 %v83
    %v235 = vunpack.c.l.b16 %v84
    %v236 = vunpack.c.l.b16 %v85
    %v237 = vunpack.c.l.b16 %v86
    %v238 = vunpack.c.l.b16 %v87
    %v239 = vunpack.c.l.b16 %v88
    %v240 = vunpack.c.l.b16 %v89
    %v241 = vunpack.c.l.b16 %v90
    %v242 = vunpack.c.l.b16 %v91
    %v243 = vunpack.c.l.b16 %v92
    %v244 = vunpack.c.l.b16 %v93
    %v245 = vunpack.c.l.b16 %v94
    %v246 = vunpack.c.l.b16 %v95
    %v247 = vunpack.c.l.b16 %v96
    %v248 = vunpack.c.l.b16 %v97
    %v249 = vunpack.c.l.b16 %v98
    %v250 = vpack.c.b16 %v187, %v186
    %v251 = vpack.c.b16 %v189, %v188
    %v252 = vpack.c.b16 %v191, %v190
    %v253 = vpack.c.b16 %v193, %v192
    %v254 = vpack.c.b16 %v195, %v194
    %v255 = vpack.c.b16 %v197, %v196
    %v256 = vpack.c.b16 %v199, %v198
    %v257 = vpack.c.b16 %v201, %v200
    %v258 = vpack.c.b16 %v203, %v202
    %v259 = vpack.c.b16 %v205, %v204
    %v260 = vpack.c.b16 %v207, %v206
    %v261 = vpack.c.b16 %v209, %v208
    %v262 = vpack.c.b16 %v211, %v210
    %v263 = vpack.c.b16 %v213, %v212
    %v264 = vpack.c.b16 %v215, %v214
    %v265 = vpack.c.b16 %v217, %v216
    %v266 = vpack.c.b16 %v219, %v218
    %v267 = vpack.c.b16 %v221, %v220
    %v268 = vpack.c.b16 %v223, %v222
    %v269 = vpack.c.b16 %v225, %v224
    %v270 = vpack.c.b16 %v227, %v226
    %v271 = vpack.c.b16 %v229, %v228
    %v272 = vpack.c.b16 %v231, %v230
    %v273 = vpack.c.b16 %v233, %v232
    %v274 = vpack.c.b16 %v235, %v234
    %v275 = vpack.c.b16 %v237, %v236
    %v276 = vpack.c.b16 %v239, %v238
    %v277 = vpack.c.b16 %v241, %v240
    %v278 = vpack.c.b16 %v243, %v242
    %v279 = vpack.c.b16 %v245, %v244
    %v280 = vpack.c.b16 %v247, %v246
    %v281 = vpack.c.b16 %v249, %v248
    %v330 = vunpack.c.l.b16 %v99
    %v331 = vunpack.c.l.b16 %v100
    %v332 = vunpack.c.l.b16 %v101
    %v333 = vunpack.c.l.b16 %v102
    %v334 = vunpack.c.l.b16 %v103
    %v335 = vunpack.c.l.b16 %v104
    %v336 = vunpack.c.l.b16 %v105
    %v337 = vunpack.c.l.b16 %v106
    %v338 = vunpack.c.l.b16 %v107
    %v339 = vunpack.c.l.b16 %v108
    %v340 = vunpack.c.l.b16 %v109
    %v341 = vunpack.c.l.b16 %v110
    %v342 = vunpack.c.l.b16 %v111
    %v343 = vunpack.c.l.b16 %v112
    %v344 = vunpack.c.l.b16 %v113
    %v345 = vunpack.c.l.b16 %v114
    %v346 = vpack.c.b16 %v331, %v330
    %v347 = vpack.c.b16 %v333, %v332
    %v348 = vpack.c.b16 %v335, %v334
    %v349 = vpack.c.b16 %v337, %v336
    %v350 = vpack.c.b16 %v339, %v338
    %v351 = vpack.c.b16 %v341, %v340
    %v352 = vpack.c.b16 %v343, %v342
    %v353 = vpack.c.b16 %v345, %v344
    %362 = vmatprep.subr.bf16.mxu0 0
    %363 = vmatpush1.bf16.msra.mxu0 %v346
    %364 = vmatprep.subr.bf16.mxu0 0
    %365 = vmatpush1.bf16.msra.mxu0 %v347
    %366 = vmatprep.subr.bf16.mxu0 0
    %367 = vmatpush1.bf16.msra.mxu0 %v348
    %368 = vmatprep.subr.bf16.mxu0 0
    %369 = vmatpush1.bf16.msra.mxu0 %v349
    %370 = vmatprep.subr.bf16.mxu0 0
    %371 = vmatpush1.bf16.msra.mxu0 %v350
    %372 = vmatprep.subr.bf16.mxu0 0
    %373 = vmatpush1.bf16.msra.mxu0 %v351
    %374 = vmatprep.subr.bf16.mxu0 0
    %375 = vmatpush1.bf16.msra.mxu0 %v352
    %376 = vmatprep.subr.bf16.mxu0 0
    %377 = vmatpush1.bf16.msra.mxu0 %v353
    %378 = vmatprep.subr.bf16.mxu0 0
    %379 = vmatpush1.bf16.msra.mxu0 0
    %380 = vmatprep.subr.bf16.mxu0 0
    %381 = vmatpush1.bf16.msra.mxu0 0
    %382 = vmatprep.subr.bf16.mxu0 0
    %383 = vmatpush1.bf16.msra.mxu0 0
    %384 = vmatprep.subr.bf16.mxu0 0
    %385 = vmatpush1.bf16.msra.mxu0 0
    %386 = vmatprep.subr.bf16.mxu0 0
    %387 = vmatpush1.bf16.msra.mxu0 0
    %388 = vmatprep.subr.bf16.mxu0 0
    %389 = vmatpush1.bf16.msra.mxu0 0
    %390 = vmatprep.subr.bf16.mxu0 0
    %391 = vmatpush1.bf16.msra.mxu0 0
    %392 = vmatprep.subr.bf16.mxu0 0
    %393 = vmatpush1.bf16.msra.mxu0 0
    %394 = vmatprep.mubr.bf16.mxu0 0
    %395 = vmatmul.mubr.bf16.gmra.mrb[0].mxu0 %v250
    %v396 = vpop.f32.mrb[0].mxu0
    %v397 = vadd.f32 %v120, %v396
    %v398 = vpop.f32.mrb[0].mxu0
    %v399 = vpop.f32.mrb[0].mxu0
    %v400 = vadd.f32 %v120, %v399
    %v401 = vpop.f32.mrb[0].mxu0
    %402 = vmatprep.mubr.bf16.mxu0 0
    %403 = vmatmul.mubr.bf16.gmra.mrb[0].mxu0 %v251
    %v404 = vpop.f32.mrb[0].mxu0
    %v405 = vadd.f32 %v120, %v404
    %v406 = vpop.f32.mrb[0].mxu0
    %v407 = vpop.f32.mrb[0].mxu0
    %v408 = vadd.f32 %v120, %v407
    %v409 = vpop.f32.mrb[0].mxu0
    %410 = vmatprep.mubr.bf16.mxu0 0
    %411 = vmatmul.mubr.bf16.gmra.mrb[0].mxu0 %v252
    %v412 = vpop.f32.mrb[0].mxu0
    %v413 = vadd.f32 %v120, %v412
    %v414 = vpop.f32.mrb[0].mxu0
    %v415 = vpop.f32.mrb[0].mxu0
    %v416 = vadd.f32 %v120, %v415
    %v417 = vpop.f32.mrb[0].mxu0
    %418 = vmatprep.mubr.bf16.mxu0 0
    %419 = vmatmul.mubr.bf16.gmra.mrb[0].mxu0 %v253
    %v420 = vpop.f32.mrb[0].mxu0
    %v421 = vadd.f32 %v120, %v420
    %v422 = vpop.f32.mrb[0].mxu0
    %v423 = vpop.f32.mrb[0].mxu0
    %v424 = vadd.f32 %v120, %v423
    %v425 = vpop.f32.mrb[0].mxu0
    %426 = vmatprep.mubr.bf16.mxu0 0
    %427 = vmatmul.mubr.bf16.gmra.mrb[0].mxu0 %v254
    %v428 = vpop.f32.mrb[0].mxu0
    %v429 = vadd.f32 %v120, %v428
    %v430 = vpop.f32.mrb[0].mxu0
    %v431 = vpop.f32.mrb[0].mxu0
    %v432 = vadd.f32 %v120, %v431
    %v433 = vpop.f32.mrb[0].mxu0
    %434 = vmatprep.mubr.bf16.mxu0 0
    %435 = vmatmul.mubr.bf16.gmra.mrb[0].mxu0 %v255
    %v436 = vpop.f32.mrb[0].mxu0
    %v437 = vadd.f32 %v120, %v436
    %v438 = vpop.f32.mrb[0].mxu0
    %v439 = vpop.f32.mrb[0].mxu0
    %v440 = vadd.f32 %v120, %v439
    %v441 = vpop.f32.mrb[0].mxu0
    %442 = vmatprep.mubr.bf16.mxu0 0
    %443 = vmatmul.mubr.bf16.gmra.mrb[0].mxu0 %v256
    %v444 = vpop.f32.mrb[0].mxu0
    %v445 = vadd.f32 %v120, %v444
    %v446 = vpop.f32.mrb[0].mxu0
    %v447 = vpop.f32.mrb[0].mxu0
    %v448 = vadd.f32 %v120, %v447
    %v449 = vpop.f32.mrb[0].mxu0
    %450 = vmatprep.mubr.bf16.mxu0 0
    %451 = vmatmul.mubr.bf16.gmra.mrb[0].mxu0 %v257
    %v452 = vpop.f32.mrb[0].mxu0
    %v453 = vadd.f32 %v120, %v452
    %v454 = vpop.f32.mrb[0].mxu0
    %v455 = vpop.f32.mrb[0].mxu0
    %v456 = vadd.f32 %v120, %v455
    %v457 = vpop.f32.mrb[0].mxu0
    %458 = vmatprep.mubr.bf16.mxu0 0
    %459 = vmatmul.mubr.bf16.gmra.mrb[0].mxu0 %v258
    %v460 = vpop.f32.mrb[0].mxu0
    %v461 = vadd.f32 %v120, %v460
    %v462 = vpop.f32.mrb[0].mxu0
    %v463 = vpop.f32.mrb[0].mxu0
    %v464 = vadd.f32 %v120, %v463
    %v465 = vpop.f32.mrb[0].mxu0
    %466 = vmatprep.mubr.bf16.mxu0 0
    %467 = vmatmul.mubr.bf16.gmra.mrb[0].mxu0 %v259
    %v468 = vpop.f32.mrb[0].mxu0
    %v469 = vadd.f32 %v120, %v468
    %v470 = vpop.f32.mrb[0].mxu0
    %v471 = vpop.f32.mrb[0].mxu0
    %v472 = vadd.f32 %v120, %v471
    %v473 = vpop.f32.mrb[0].mxu0
    %474 = vmatprep.mubr.bf16.mxu0 0
    %475 = vmatmul.mubr.bf16.gmra.mrb[0].mxu0 %v260
    %v476 = vpop.f32.mrb[0].mxu0
    %v477 = vadd.f32 %v120, %v476
    %v478 = vpop.f32.mrb[0].mxu0
    %v479 = vpop.f32.mrb[0].mxu0
    %v480 = vadd.f32 %v120, %v479
    %v481 = vpop.f32.mrb[0].mxu0
    %482 = vmatprep.mubr.bf16.mxu0 0
    %483 = vmatmul.mubr.bf16.gmra.mrb[0].mxu0 %v261
    %v484 = vpop.f32.mrb[0].mxu0
    %v485 = vadd.f32 %v120, %v484
    %v486 = vpop.f32.mrb[0].mxu0
    %v487 = vpop.f32.mrb[0].mxu0
    %v488 = vadd.f32 %v120, %v487
    %v489 = vpop.f32.mrb[0].mxu0
    %490 = vmatprep.mubr.bf16.mxu0 0
    %491 = vmatmul.mubr.bf16.gmra.mrb[0].mxu0 %v262
    %v492 = vpop.f32.mrb[0].mxu0
    %v493 = vadd.f32 %v120, %v492
    %v494 = vpop.f32.mrb[0].mxu0
    %v495 = vpop.f32.mrb[0].mxu0
    %v496 = vadd.f32 %v120, %v495
    %v497 = vpop.f32.mrb[0].mxu0
    %498 = vmatprep.mubr.bf16.mxu0 0
    %499 = vmatmul.mubr.bf16.gmra.mrb[0].mxu0 %v263
    %v500 = vpop.f32.mrb[0].mxu0
    %v501 = vadd.f32 %v120, %v500
    %v502 = vpop.f32.mrb[0].mxu0
    %v503 = vpop.f32.mrb[0].mxu0
    %v504 = vadd.f32 %v120, %v503
    %v505 = vpop.f32.mrb[0].mxu0
    %506 = vmatprep.mubr.bf16.mxu0 0
    %507 = vmatmul.mubr.bf16.gmra.mrb[0].mxu0 %v264
    %v508 = vpop.f32.mrb[0].mxu0
    %v509 = vadd.f32 %v120, %v508
    %v510 = vpop.f32.mrb[0].mxu0
    %v511 = vpop.f32.mrb[0].mxu0
    %v512 = vadd.f32 %v120, %v511
    %v513 = vpop.f32.mrb[0].mxu0
    %514 = vmatprep.mubr.bf16.mxu0 0
    %515 = vmatmul.mubr.bf16.gmra.mrb[0].mxu0 %v265
    %v516 = vpop.f32.mrb[0].mxu0
    %v517 = vadd.f32 %v120, %v516
    %v518 = vpop.f32.mrb[0].mxu0
    %v519 = vpop.f32.mrb[0].mxu0
    %v520 = vadd.f32 %v120, %v519
    %v521 = vpop.f32.mrb[0].mxu0
    %522 = vmatprep.mubr.bf16.mxu0 0
    %523 = vmatmul.mubr.bf16.gmra.mrb[0].mxu0 %v266
    %v524 = vpop.f32.mrb[0].mxu0
    %v525 = vadd.f32 %v120, %v524
    %v526 = vpop.f32.mrb[0].mxu0
    %v527 = vpop.f32.mrb[0].mxu0
    %v528 = vadd.f32 %v120, %v527
    %v529 = vpop.f32.mrb[0].mxu0
    %530 = vmatprep.mubr.bf16.mxu0 0
    %531 = vmatmul.mubr.bf16.gmra.mrb[0].mxu0 %v267
    %v532 = vpop.f32.mrb[0].mxu0
    %v533 = vadd.f32 %v120, %v532
    %v534 = vpop.f32.mrb[0].mxu0
    %v535 = vpop.f32.mrb[0].mxu0
    %v536 = vadd.f32 %v120, %v535
    %v537 = vpop.f32.mrb[0].mxu0
    %538 = vmatprep.mubr.bf16.mxu0 0
    %539 = vmatmul.mubr.bf16.gmra.mrb[0].mxu0 %v268
    %v540 = vpop.f32.mrb[0].mxu0
    %v541 = vadd.f32 %v120, %v540
    %v542 = vpop.f32.mrb[0].mxu0
    %v543 = vpop.f32.mrb[0].mxu0
    %v544 = vadd.f32 %v120, %v543
    %v545 = vpop.f32.mrb[0].mxu0
    %546 = vmatprep.mubr.bf16.mxu0 0
    %547 = vmatmul.mubr.bf16.gmra.mrb[0].mxu0 %v269
    %v548 = vpop.f32.mrb[0].mxu0
    %v549 = vadd.f32 %v120, %v548
    %v550 = vpop.f32.mrb[0].mxu0
    %v551 = vpop.f32.mrb[0].mxu0
    %v552 = vadd.f32 %v120, %v551
    %v553 = vpop.f32.mrb[0].mxu0
    %554 = vmatprep.mubr.bf16.mxu0 0
    %555 = vmatmul.mubr.bf16.gmra.mrb[0].mxu0 %v270
    %v556 = vpop.f32.mrb[0].mxu0
    %v557 = vadd.f32 %v120, %v556
    %v558 = vpop.f32.mrb[0].mxu0
    %v559 = vpop.f32.mrb[0].mxu0
    %v560 = vadd.f32 %v120, %v559
    %v561 = vpop.f32.mrb[0].mxu0
    %562 = vmatprep.mubr.bf16.mxu0 0
    %563 = vmatmul.mubr.bf16.gmra.mrb[0].mxu0 %v271
    %v564 = vpop.f32.mrb[0].mxu0
    %v565 = vadd.f32 %v120, %v564
    %v566 = vpop.f32.mrb[0].mxu0
    %v567 = vpop.f32.mrb[0].mxu0
    %v568 = vadd.f32 %v120, %v567
    %v569 = vpop.f32.mrb[0].mxu0
    %570 = vmatprep.mubr.bf16.mxu0 0
    %571 = vmatmul.mubr.bf16.gmra.mrb[0].mxu0 %v272
    %v572 = vpop.f32.mrb[0].mxu0
    %v573 = vadd.f32 %v120, %v572
    %v574 = vpop.f32.mrb[0].mxu0
    %v575 = vpop.f32.mrb[0].mxu0
    %v576 = vadd.f32 %v120, %v575
    %v577 = vpop.f32.mrb[0].mxu0
    %578 = vmatprep.mubr.bf16.mxu0 0
    %579 = vmatmul.mubr.bf16.gmra.mrb[0].mxu0 %v273
    %v580 = vpop.f32.mrb[0].mxu0
    %v581 = vadd.f32 %v120, %v580
    %v582 = vpop.f32.mrb[0].mxu0
    %v583 = vpop.f32.mrb[0].mxu0
    %v584 = vadd.f32 %v120, %v583
    %v585 = vpop.f32.mrb[0].mxu0
    %586 = vmatprep.mubr.bf16.mxu0 0
    %587 = vmatmul.mubr.bf16.gmra.mrb[0].mxu0 %v274
    %v588 = vpop.f32.mrb[0].mxu0
    %v589 = vadd.f32 %v120, %v588
    %v590 = vpop.f32.mrb[0].mxu0
    %v591 = vpop.f32.mrb[0].mxu0
    %v592 = vadd.f32 %v120, %v591
    %v593 = vpop.f32.mrb[0].mxu0
    %594 = vmatprep.mubr.bf16.mxu0 0
    %595 = vmatmul.mubr.bf16.gmra.mrb[0].mxu0 %v275
    %v596 = vpop.f32.mrb[0].mxu0
    %v597 = vadd.f32 %v120, %v596
    %v598 = vpop.f32.mrb[0].mxu0
    %v599 = vpop.f32.mrb[0].mxu0
    %v600 = vadd.f32 %v120, %v599
    %v601 = vpop.f32.mrb[0].mxu0
    %602 = vmatprep.mubr.bf16.mxu0 0
    %603 = vmatmul.mubr.bf16.gmra.mrb[0].mxu0 %v276
    %v604 = vpop.f32.mrb[0].mxu0
    %v605 = vadd.f32 %v120, %v604
    %v606 = vpop.f32.mrb[0].mxu0
    %v607 = vpop.f32.mrb[0].mxu0
    %v608 = vadd.f32 %v120, %v607
    %v609 = vpop.f32.mrb[0].mxu0
    %610 = vmatprep.mubr.bf16.mxu0 0
    %611 = vmatmul.mubr.bf16.gmra.mrb[0].mxu0 %v277
    %v612 = vpop.f32.mrb[0].mxu0
    %v613 = vadd.f32 %v120, %v612
    %v614 = vpop.f32.mrb[0].mxu0
    %v615 = vpop.f32.mrb[0].mxu0
    %v616 = vadd.f32 %v120, %v615
    %v617 = vpop.f32.mrb[0].mxu0
    %618 = vmatprep.mubr.bf16.mxu0 0
    %619 = vmatmul.mubr.bf16.gmra.mrb[0].mxu0 %v278
    %v620 = vpop.f32.mrb[0].mxu0
    %v621 = vadd.f32 %v120, %v620
    %v622 = vpop.f32.mrb[0].mxu0
    %v623 = vpop.f32.mrb[0].mxu0
    %v624 = vadd.f32 %v120, %v623
    %v625 = vpop.f32.mrb[0].mxu0
    %626 = vmatprep.mubr.bf16.mxu0 0
    %627 = vmatmul.mubr.bf16.gmra.mrb[0].mxu0 %v279
    %v628 = vpop.f32.mrb[0].mxu0
    %v629 = vadd.f32 %v120, %v628
    %v630 = vpop.f32.mrb[0].mxu0
    %v631 = vpop.f32.mrb[0].mxu0
    %v632 = vadd.f32 %v120, %v631
    %v633 = vpop.f32.mrb[0].mxu0
    %634 = vmatprep.mubr.bf16.mxu0 0
    %635 = vmatmul.mubr.bf16.gmra.mrb[0].mxu0 %v280
    %v636 = vpop.f32.mrb[0].mxu0
    %v637 = vadd.f32 %v120, %v636
    %v638 = vpop.f32.mrb[0].mxu0
    %v639 = vpop.f32.mrb[0].mxu0
    %v640 = vadd.f32 %v120, %v639
    %v641 = vpop.f32.mrb[0].mxu0
    %642 = vmatprep.mubr.bf16.mxu0 0
    %643 = vmatmul.mubr.bf16.gmra.mrb[0].mxu0 %v281
    %v644 = vpop.f32.mrb[0].mxu0
    %v645 = vadd.f32 %v120, %v644
    %v646 = vpop.f32.mrb[0].mxu0
    %v647 = vpop.f32.mrb[0].mxu0
    %v648 = vadd.f32 %v120, %v647
    %v649 = vpop.f32.mrb[0].mxu0
    %650 = vdwg.mxu0
    %v651 = vmax.f32 %v397, 0.0
    %v652 = vmax.f32 %v400, 0.0
    %v653 = vmax.f32 %v405, 0.0
    %v654 = vmax.f32 %v408, 0.0
    %v655 = vmax.f32 %v413, 0.0
    %v656 = vmax.f32 %v416, 0.0
    %v657 = vmax.f32 %v421, 0.0
    %v658 = vmax.f32 %v424, 0.0
    %v659 = vmax.f32 %v429, 0.0
    %v660 = vmax.f32 %v432, 0.0
    %v661 = vmax.f32 %v437, 0.0
    %v662 = vmax.f32 %v440, 0.0
    %v663 = vmax.f32 %v445, 0.0
    %v664 = vmax.f32 %v448, 0.0
    %v665 = vmax.f32 %v453, 0.0
    %v666 = vmax.f32 %v456, 0.0
    %v667 = vmax.f32 %v461, 0.0
    %v668 = vmax.f32 %v464, 0.0
    %v669 = vmax.f32 %v469, 0.0
    %v670 = vmax.f32 %v472, 0.0
    %v671 = vmax.f32 %v477, 0.0
    %v672 = vmax.f32 %v480, 0.0
    %v673 = vmax.f32 %v485, 0.0
    %v674 = vmax.f32 %v488, 0.0
    %v675 = vmax.f32 %v493, 0.0
    %v676 = vmax.f32 %v496, 0.0
    %v677 = vmax.f32 %v501, 0.0
    %v678 = vmax.f32 %v504, 0.0
    %v679 = vmax.f32 %v509, 0.0
    %v680 = vmax.f32 %v512, 0.0
    %v681 = vmax.f32 %v517, 0.0
    %v682 = vmax.f32 %v520, 0.0
    %v683 = vmax.f32 %v525, 0.0
    %v684 = vmax.f32 %v528, 0.0
    %v685 = vmax.f32 %v533, 0.0
    %v686 = vmax.f32 %v536, 0.0
    %v687 = vmax.f32 %v541, 0.0
    %v688 = vmax.f32 %v544, 0.0
    %v689 = vmax.f32 %v549, 0.0
    %v690 = vmax.f32 %v552, 0.0
    %v691 = vmax.f32 %v557, 0.0
    %v692 = vmax.f32 %v560, 0.0
    %v693 = vmax.f32 %v565, 0.0
    %v694 = vmax.f32 %v568, 0.0
    %v695 = vmax.f32 %v573, 0.0
    %v696 = vmax.f32 %v576, 0.0
    %v697 = vmax.f32 %v581, 0.0
    %v698 = vmax.f32 %v584, 0.0
    %v699 = vmax.f32 %v589, 0.0
    %v700 = vmax.f32 %v592, 0.0
    %v701 = vmax.f32 %v597, 0.0
    %v702 = vmax.f32 %v600, 0.0
    %v703 = vmax.f32 %v605, 0.0
    %v704 = vmax.f32 %v608, 0.0
    %v705 = vmax.f32 %v613, 0.0
    %v706 = vmax.f32 %v616, 0.0
    %v707 = vmax.f32 %v621, 0.0
    %v708 = vmax.f32 %v624, 0.0
    %v709 = vmax.f32 %v629, 0.0
    %v710 = vmax.f32 %v632, 0.0
    %v711 = vmax.f32 %v637, 0.0
    %v712 = vmax.f32 %v640, 0.0
    %v713 = vmax.f32 %v645, 0.0
    %v714 = vmax.f32 %v648, 0.0
    %v715 = vpack.c.bf16 %v652, %v651
    %v716 = vpack.c.bf16 %v654, %v653
    %v717 = vpack.c.bf16 %v656, %v655
    %v718 = vpack.c.bf16 %v658, %v657
    %v719 = vpack.c.bf16 %v660, %v659
    %v720 = vpack.c.bf16 %v662, %v661
    %v721 = vpack.c.bf16 %v664, %v663
    %v722 = vpack.c.bf16 %v666, %v665
    %v723 = vpack.c.bf16 %v668, %v667
    %v724 = vpack.c.bf16 %v670, %v669
    %v725 = vpack.c.bf16 %v672, %v671
    %v726 = vpack.c.bf16 %v674, %v673
    %v727 = vpack.c.bf16 %v676, %v675
    %v728 = vpack.c.bf16 %v678, %v677
    %v729 = vpack.c.bf16 %v680, %v679
    %v730 = vpack.c.bf16 %v682, %v681
    %v731 = vpack.c.bf16 %v684, %v683
    %v732 = vpack.c.bf16 %v686, %v685
    %v733 = vpack.c.bf16 %v688, %v687
    %v734 = vpack.c.bf16 %v690, %v689
    %v735 = vpack.c.bf16 %v692, %v691
    %v736 = vpack.c.bf16 %v694, %v693
    %v737 = vpack.c.bf16 %v696, %v695
    %v738 = vpack.c.bf16 %v698, %v697
    %v739 = vpack.c.bf16 %v700, %v699
    %v740 = vpack.c.bf16 %v702, %v701
    %v741 = vpack.c.bf16 %v704, %v703
    %v742 = vpack.c.bf16 %v706, %v705
    %v743 = vpack.c.bf16 %v708, %v707
    %v744 = vpack.c.bf16 %v710, %v709
    %v745 = vpack.c.bf16 %v712, %v711
    %v746 = vpack.c.bf16 %v714, %v713
    %v747 = vld [vmem:[%s3] sm:$0xf]
    %v748 = vld [vmem:[%s3 + $0x4] sm:$0xf]
    %v749 = vld [vmem:[%s3 + $0x8] sm:$0xf]
    %v750 = vld [vmem:[%s3 + $0xc] sm:$0xf]
    %v751 = vld [vmem:[%s3 + $0x10] sm:$0xf]
    %v752 = vld [vmem:[%s3 + $0x14] sm:$0xf]
    %v753 = vld [vmem:[%s3 + $0x18] sm:$0xf]
    %v754 = vld [vmem:[%s3 + $0x1c] sm:$0xf]
    %v755 = vld [vmem:[%s3 + $0x20] sm:$0xf]
    %v756 = vld [vmem:[%s3 + $0x24] sm:$0xf]
    %v757 = vld [vmem:[%s3 + $0x28] sm:$0xf]
    %v758 = vld [vmem:[%s3 + $0x2c] sm:$0xf]
    %v759 = vld [vmem:[%s3 + $0x30] sm:$0xf]
    %v760 = vld [vmem:[%s3 + $0x34] sm:$0xf]
    %v761 = vld [vmem:[%s3 + $0x38] sm:$0xf]
    %v762 = vld [vmem:[%s3 + $0x3c] sm:$0xf]
    %v763 = vld [vmem:[%s4] sm:$0x1]
    %v765 = vlaneseq
    %v766 = vshrl.u32 %v765, 7
    %v767 = vsub.s32 0, %v766
    %v768 = vrot.slane %v763, %v767
    %v786 = vunpack.c.l.b16 %v747
    %v787 = vunpack.c.l.b16 %v748
    %v788 = vunpack.c.l.b16 %v749
    %v789 = vunpack.c.l.b16 %v750
    %v790 = vunpack.c.l.b16 %v751
    %v791 = vunpack.c.l.b16 %v752
    %v792 = vunpack.c.l.b16 %v753
    %v793 = vunpack.c.l.b16 %v754
    %v794 = vunpack.c.l.b16 %v755
    %v795 = vunpack.c.l.b16 %v756
    %v796 = vunpack.c.l.b16 %v757
    %v797 = vunpack.c.l.b16 %v758
    %v798 = vunpack.c.l.b16 %v759
    %v799 = vunpack.c.l.b16 %v760
    %v800 = vunpack.c.l.b16 %v761
    %v801 = vunpack.c.l.b16 %v762
    %v802 = vpack.c.b16 %v787, %v786
    %v803 = vpack.c.b16 %v789, %v788
    %v804 = vpack.c.b16 %v791, %v790
    %v805 = vpack.c.b16 %v793, %v792
    %v806 = vpack.c.b16 %v795, %v794
    %v807 = vpack.c.b16 %v797, %v796
    %v808 = vpack.c.b16 %v799, %v798
    %v809 = vpack.c.b16 %v801, %v800
    %818 = vmatprep.subr.bf16.mxu0 0
    %819 = vmatpush1.bf16.msra.mxu0 %v802
    %820 = vmatprep.subr.bf16.mxu0 0
    %821 = vmatpush1.bf16.msra.mxu0 %v803
    %822 = vmatprep.subr.bf16.mxu0 0
    %823 = vmatpush1.bf16.msra.mxu0 %v804
    %824 = vmatprep.subr.bf16.mxu0 0
    %825 = vmatpush1.bf16.msra.mxu0 %v805
    %826 = vmatprep.subr.bf16.mxu0 0
    %827 = vmatpush1.bf16.msra.mxu0 %v806
    %828 = vmatprep.subr.bf16.mxu0 0
    %829 = vmatpush1.bf16.msra.mxu0 %v807
    %830 = vmatprep.subr.bf16.mxu0 0
    %831 = vmatpush1.bf16.msra.mxu0 %v808
    %832 = vmatprep.subr.bf16.mxu0 0
    %833 = vmatpush1.bf16.msra.mxu0 %v809
    %834 = vmatprep.subr.bf16.mxu0 0
    %835 = vmatpush1.bf16.msra.mxu0 0
    %836 = vmatprep.subr.bf16.mxu0 0
    %837 = vmatpush1.bf16.msra.mxu0 0
    %838 = vmatprep.subr.bf16.mxu0 0
    %839 = vmatpush1.bf16.msra.mxu0 0
    %840 = vmatprep.subr.bf16.mxu0 0
    %841 = vmatpush1.bf16.msra.mxu0 0
    %842 = vmatprep.subr.bf16.mxu0 0
    %843 = vmatpush1.bf16.msra.mxu0 0
    %844 = vmatprep.subr.bf16.mxu0 0
    %845 = vmatpush1.bf16.msra.mxu0 0
    %846 = vmatprep.subr.bf16.mxu0 0
    %847 = vmatpush1.bf16.msra.mxu0 0
    %848 = vmatprep.subr.bf16.mxu0 0
    %849 = vmatpush1.bf16.msra.mxu0 0
    %850 = vmatprep.mubr.bf16.mxu0 0
    %851 = vmatmul.mubr.bf16.gmra.mrb[0].mxu0 %v715
    %v852 = vpop.f32.mrb[0].mxu0
    %v853 = vadd.f32 %v768, %v852
    %v854 = vpop.f32.mrb[0].mxu0
    %v855 = vpop.f32.mrb[0].mxu0
    %v856 = vadd.f32 %v768, %v855
    %v857 = vpop.f32.mrb[0].mxu0
    %858 = vmatprep.mubr.bf16.mxu0 0
    %859 = vmatmul.mubr.bf16.gmra.mrb[0].mxu0 %v716
    %v860 = vpop.f32.mrb[0].mxu0
    %v861 = vadd.f32 %v768, %v860
    %v862 = vpop.f32.mrb[0].mxu0
    %v863 = vpop.f32.mrb[0].mxu0
    %v864 = vadd.f32 %v768, %v863
    %v865 = vpop.f32.mrb[0].mxu0
    %866 = vmatprep.mubr.bf16.mxu0 0
    %867 = vmatmul.mubr.bf16.gmra.mrb[0].mxu0 %v717
    %v868 = vpop.f32.mrb[0].mxu0
    %v869 = vadd.f32 %v768, %v868
    %v870 = vpop.f32.mrb[0].mxu0
    %v871 = vpop.f32.mrb[0].mxu0
    %v872 = vadd.f32 %v768, %v871
    %v873 = vpop.f32.mrb[0].mxu0
    %874 = vmatprep.mubr.bf16.mxu0 0
    %875 = vmatmul.mubr.bf16.gmra.mrb[0].mxu0 %v718
    %v876 = vpop.f32.mrb[0].mxu0
    %v877 = vadd.f32 %v768, %v876
    %v878 = vpop.f32.mrb[0].mxu0
    %v879 = vpop.f32.mrb[0].mxu0
    %v880 = vadd.f32 %v768, %v879
    %v881 = vpop.f32.mrb[0].mxu0
    %882 = vmatprep.mubr.bf16.mxu0 0
    %883 = vmatmul.mubr.bf16.gmra.mrb[0].mxu0 %v719
    %v884 = vpop.f32.mrb[0].mxu0
    %v885 = vadd.f32 %v768, %v884
    %v886 = vpop.f32.mrb[0].mxu0
    %v887 = vpop.f32.mrb[0].mxu0
    %v888 = vadd.f32 %v768, %v887
    %v889 = vpop.f32.mrb[0].mxu0
    %890 = vmatprep.mubr.bf16.mxu0 0
    %891 = vmatmul.mubr.bf16.gmra.mrb[0].mxu0 %v720
    %v892 = vpop.f32.mrb[0].mxu0
    %v893 = vadd.f32 %v768, %v892
    %v894 = vpop.f32.mrb[0].mxu0
    %v895 = vpop.f32.mrb[0].mxu0
    %v896 = vadd.f32 %v768, %v895
    %v897 = vpop.f32.mrb[0].mxu0
    %898 = vmatprep.mubr.bf16.mxu0 0
    %899 = vmatmul.mubr.bf16.gmra.mrb[0].mxu0 %v721
    %v900 = vpop.f32.mrb[0].mxu0
    %v901 = vadd.f32 %v768, %v900
    %v902 = vpop.f32.mrb[0].mxu0
    %v903 = vpop.f32.mrb[0].mxu0
    %v904 = vadd.f32 %v768, %v903
    %v905 = vpop.f32.mrb[0].mxu0
    %906 = vmatprep.mubr.bf16.mxu0 0
    %907 = vmatmul.mubr.bf16.gmra.mrb[0].mxu0 %v722
    %v908 = vpop.f32.mrb[0].mxu0
    %v909 = vadd.f32 %v768, %v908
    %v910 = vpop.f32.mrb[0].mxu0
    %v911 = vpop.f32.mrb[0].mxu0
    %v912 = vadd.f32 %v768, %v911
    %v913 = vpop.f32.mrb[0].mxu0
    %914 = vmatprep.mubr.bf16.mxu0 0
    %915 = vmatmul.mubr.bf16.gmra.mrb[0].mxu0 %v723
    %v916 = vpop.f32.mrb[0].mxu0
    %v917 = vadd.f32 %v768, %v916
    %v918 = vpop.f32.mrb[0].mxu0
    %v919 = vpop.f32.mrb[0].mxu0
    %v920 = vadd.f32 %v768, %v919
    %v921 = vpop.f32.mrb[0].mxu0
    %922 = vmatprep.mubr.bf16.mxu0 0
    %923 = vmatmul.mubr.bf16.gmra.mrb[0].mxu0 %v724
    %v924 = vpop.f32.mrb[0].mxu0
    %v925 = vadd.f32 %v768, %v924
    %v926 = vpop.f32.mrb[0].mxu0
    %v927 = vpop.f32.mrb[0].mxu0
    %v928 = vadd.f32 %v768, %v927
    %v929 = vpop.f32.mrb[0].mxu0
    %930 = vmatprep.mubr.bf16.mxu0 0
    %931 = vmatmul.mubr.bf16.gmra.mrb[0].mxu0 %v725
    %v932 = vpop.f32.mrb[0].mxu0
    %v933 = vadd.f32 %v768, %v932
    %v934 = vpop.f32.mrb[0].mxu0
    %v935 = vpop.f32.mrb[0].mxu0
    %v936 = vadd.f32 %v768, %v935
    %v937 = vpop.f32.mrb[0].mxu0
    %938 = vmatprep.mubr.bf16.mxu0 0
    %939 = vmatmul.mubr.bf16.gmra.mrb[0].mxu0 %v726
    %v940 = vpop.f32.mrb[0].mxu0
    %v941 = vadd.f32 %v768, %v940
    %v942 = vpop.f32.mrb[0].mxu0
    %v943 = vpop.f32.mrb[0].mxu0
    %v944 = vadd.f32 %v768, %v943
    %v945 = vpop.f32.mrb[0].mxu0
    %946 = vmatprep.mubr.bf16.mxu0 0
    %947 = vmatmul.mubr.bf16.gmra.mrb[0].mxu0 %v727
    %v948 = vpop.f32.mrb[0].mxu0
    %v949 = vadd.f32 %v768, %v948
    %v950 = vpop.f32.mrb[0].mxu0
    %v951 = vpop.f32.mrb[0].mxu0
    %v952 = vadd.f32 %v768, %v951
    %v953 = vpop.f32.mrb[0].mxu0
    %954 = vmatprep.mubr.bf16.mxu0 0
    %955 = vmatmul.mubr.bf16.gmra.mrb[0].mxu0 %v728
    %v956 = vpop.f32.mrb[0].mxu0
    %v957 = vadd.f32 %v768, %v956
    %v958 = vpop.f32.mrb[0].mxu0
    %v959 = vpop.f32.mrb[0].mxu0
    %v960 = vadd.f32 %v768, %v959
    %v961 = vpop.f32.mrb[0].mxu0
    %962 = vmatprep.mubr.bf16.mxu0 0
    %963 = vmatmul.mubr.bf16.gmra.mrb[0].mxu0 %v729
    %v964 = vpop.f32.mrb[0].mxu0
    %v965 = vadd.f32 %v768, %v964
    %v966 = vpop.f32.mrb[0].mxu0
    %v967 = vpop.f32.mrb[0].mxu0
    %v968 = vadd.f32 %v768, %v967
    %v969 = vpop.f32.mrb[0].mxu0
    %970 = vmatprep.mubr.bf16.mxu0 0
    %971 = vmatmul.mubr.bf16.gmra.mrb[0].mxu0 %v730
    %v972 = vpop.f32.mrb[0].mxu0
    %v973 = vadd.f32 %v768, %v972
    %v974 = vpop.f32.mrb[0].mxu0
    %v975 = vpop.f32.mrb[0].mxu0
    %v976 = vadd.f32 %v768, %v975
    %v977 = vpop.f32.mrb[0].mxu0
    %978 = vmatprep.mubr.bf16.mxu0 0
    %979 = vmatmul.mubr.bf16.gmra.mrb[0].mxu0 %v731
    %v980 = vpop.f32.mrb[0].mxu0
    %v981 = vadd.f32 %v768, %v980
    %v982 = vpop.f32.mrb[0].mxu0
    %v983 = vpop.f32.mrb[0].mxu0
    %v984 = vadd.f32 %v768, %v983
    %v985 = vpop.f32.mrb[0].mxu0
    %986 = vmatprep.mubr.bf16.mxu0 0
    %987 = vmatmul.mubr.bf16.gmra.mrb[0].mxu0 %v732
    %v988 = vpop.f32.mrb[0].mxu0
    %v989 = vadd.f32 %v768, %v988
    %v990 = vpop.f32.mrb[0].mxu0
    %v991 = vpop.f32.mrb[0].mxu0
    %v992 = vadd.f32 %v768, %v991
    %v993 = vpop.f32.mrb[0].mxu0
    %994 = vmatprep.mubr.bf16.mxu0 0
    %995 = vmatmul.mubr.bf16.gmra.mrb[0].mxu0 %v733
    %v996 = vpop.f32.mrb[0].mxu0
    %v997 = vadd.f32 %v768, %v996
    %v998 = vpop.f32.mrb[0].mxu0
    %v999 = vpop.f32.mrb[0].mxu0
    %v1000 = vadd.f32 %v768, %v999
    %v1001 = vpop.f32.mrb[0].mxu0
    %1002 = vmatprep.mubr.bf16.mxu0 0
    %1003 = vmatmul.mubr.bf16.gmra.mrb[0].mxu0 %v734
    %v1004 = vpop.f32.mrb[0].mxu0
    %v1005 = vadd.f32 %v768, %v1004
    %v1006 = vpop.f32.mrb[0].mxu0
    %v1007 = vpop.f32.mrb[0].mxu0
    %v1008 = vadd.f32 %v768, %v1007
    %v1009 = vpop.f32.mrb[0].mxu0
    %1010 = vmatprep.mubr.bf16.mxu0 0
    %1011 = vmatmul.mubr.bf16.gmra.mrb[0].mxu0 %v735
    %v1012 = vpop.f32.mrb[0].mxu0
    %v1013 = vadd.f32 %v768, %v1012
    %v1014 = vpop.f32.mrb[0].mxu0
    %v1015 = vpop.f32.mrb[0].mxu0
    %v1016 = vadd.f32 %v768, %v1015
    %v1017 = vpop.f32.mrb[0].mxu0
    %1018 = vmatprep.mubr.bf16.mxu0 0
    %1019 = vmatmul.mubr.bf16.gmra.mrb[0].mxu0 %v736
    %v1020 = vpop.f32.mrb[0].mxu0
    %v1021 = vadd.f32 %v768, %v1020
    %v1022 = vpop.f32.mrb[0].mxu0
    %v1023 = vpop.f32.mrb[0].mxu0
    %v1024 = vadd.f32 %v768, %v1023
    %v1025 = vpop.f32.mrb[0].mxu0
    %1026 = vmatprep.mubr.bf16.mxu0 0
    %1027 = vmatmul.mubr.bf16.gmra.mrb[0].mxu0 %v737
    %v1028 = vpop.f32.mrb[0].mxu0
    %v1029 = vadd.f32 %v768, %v1028
    %v1030 = vpop.f32.mrb[0].mxu0
    %v1031 = vpop.f32.mrb[0].mxu0
    %v1032 = vadd.f32 %v768, %v1031
    %v1033 = vpop.f32.mrb[0].mxu0
    %1034 = vmatprep.mubr.bf16.mxu0 0
    %1035 = vmatmul.mubr.bf16.gmra.mrb[0].mxu0 %v738
    %v1036 = vpop.f32.mrb[0].mxu0
    %v1037 = vadd.f32 %v768, %v1036
    %v1038 = vpop.f32.mrb[0].mxu0
    %v1039 = vpop.f32.mrb[0].mxu0
    %v1040 = vadd.f32 %v768, %v1039
    %v1041 = vpop.f32.mrb[0].mxu0
    %1042 = vmatprep.mubr.bf16.mxu0 0
    %1043 = vmatmul.mubr.bf16.gmra.mrb[0].mxu0 %v739
    %v1044 = vpop.f32.mrb[0].mxu0
    %v1045 = vadd.f32 %v768, %v1044
    %v1046 = vpop.f32.mrb[0].mxu0
    %v1047 = vpop.f32.mrb[0].mxu0
    %v1048 = vadd.f32 %v768, %v1047
    %v1049 = vpop.f32.mrb[0].mxu0
    %1050 = vmatprep.mubr.bf16.mxu0 0
    %1051 = vmatmul.mubr.bf16.gmra.mrb[0].mxu0 %v740
    %v1052 = vpop.f32.mrb[0].mxu0
    %v1053 = vadd.f32 %v768, %v1052
    %v1054 = vpop.f32.mrb[0].mxu0
    %v1055 = vpop.f32.mrb[0].mxu0
    %v1056 = vadd.f32 %v768, %v1055
    %v1057 = vpop.f32.mrb[0].mxu0
    %1058 = vmatprep.mubr.bf16.mxu0 0
    %1059 = vmatmul.mubr.bf16.gmra.mrb[0].mxu0 %v741
    %v1060 = vpop.f32.mrb[0].mxu0
    %v1061 = vadd.f32 %v768, %v1060
    %v1062 = vpop.f32.mrb[0].mxu0
    %v1063 = vpop.f32.mrb[0].mxu0
    %v1064 = vadd.f32 %v768, %v1063
    %v1065 = vpop.f32.mrb[0].mxu0
    %1066 = vmatprep.mubr.bf16.mxu0 0
    %1067 = vmatmul.mubr.bf16.gmra.mrb[0].mxu0 %v742
    %v1068 = vpop.f32.mrb[0].mxu0
    %v1069 = vadd.f32 %v768, %v1068
    %v1070 = vpop.f32.mrb[0].mxu0
    %v1071 = vpop.f32.mrb[0].mxu0
    %v1072 = vadd.f32 %v768, %v1071
    %v1073 = vpop.f32.mrb[0].mxu0
    %1074 = vmatprep.mubr.bf16.mxu0 0
    %1075 = vmatmul.mubr.bf16.gmra.mrb[0].mxu0 %v743
    %v1076 = vpop.f32.mrb[0].mxu0
    %v1077 = vadd.f32 %v768, %v1076
    %v1078 = vpop.f32.mrb[0].mxu0
    %v1079 = vpop.f32.mrb[0].mxu0
    %v1080 = vadd.f32 %v768, %v1079
    %v1081 = vpop.f32.mrb[0].mxu0
    %1082 = vmatprep.mubr.bf16.mxu0 0
    %1083 = vmatmul.mubr.bf16.gmra.mrb[0].mxu0 %v744
    %v1084 = vpop.f32.mrb[0].mxu0
    %v1085 = vadd.f32 %v768, %v1084
    %v1086 = vpop.f32.mrb[0].mxu0
    %v1087 = vpop.f32.mrb[0].mxu0
    %v1088 = vadd.f32 %v768, %v1087
    %v1089 = vpop.f32.mrb[0].mxu0
    %1090 = vmatprep.mubr.bf16.mxu0 0
    %1091 = vmatmul.mubr.bf16.gmra.mrb[0].mxu0 %v745
    %v1092 = vpop.f32.mrb[0].mxu0
    %v1093 = vadd.f32 %v768, %v1092
    %v1094 = vpop.f32.mrb[0].mxu0
    %v1095 = vpop.f32.mrb[0].mxu0
    %v1096 = vadd.f32 %v768, %v1095
    %v1097 = vpop.f32.mrb[0].mxu0
    %1098 = vmatprep.mubr.bf16.mxu0 0
    %1099 = vmatmul.mubr.bf16.gmra.mrb[0].mxu0 %v746
    %v1100 = vpop.f32.mrb[0].mxu0
    %v1101 = vadd.f32 %v768, %v1100
    %v1102 = vpop.f32.mrb[0].mxu0
    %v1103 = vpop.f32.mrb[0].mxu0
    %v1104 = vadd.f32 %v768, %v1103
    %v1105 = vpop.f32.mrb[0].mxu0
    %1106 = vdwg.mxu0
    %vm1107 = vcmask 293888
    %1108 = vst.msk [vmem:[%s5] sm:$0xff] %vm1107, %v853
    %1109 = vst.msk [vmem:[%s5 + $0x8] sm:$0xff] %vm1107, %v856
    %1110 = vst.msk [vmem:[%s5 + $0x10] sm:$0xff] %vm1107, %v861
    %1111 = vst.msk [vmem:[%s5 + $0x18] sm:$0xff] %vm1107, %v864
    %1112 = vst.msk [vmem:[%s5 + $0x20] sm:$0xff] %vm1107, %v869
    %1113 = vst.msk [vmem:[%s5 + $0x28] sm:$0xff] %vm1107, %v872
    %1114 = vst.msk [vmem:[%s5 + $0x30] sm:$0xff] %vm1107, %v877
    %1115 = vst.msk [vmem:[%s5 + $0x38] sm:$0xff] %vm1107, %v880
    %1116 = vst.msk [vmem:[%s5 + $0x40] sm:$0xff] %vm1107, %v885
    %1117 = vst.msk [vmem:[%s5 + $0x48] sm:$0xff] %vm1107, %v888
    %1118 = vst.msk [vmem:[%s5 + $0x50] sm:$0xff] %vm1107, %v893
    %1119 = vst.msk [vmem:[%s5 + $0x58] sm:$0xff] %vm1107, %v896
    %1120 = vst.msk [vmem:[%s5 + $0x60] sm:$0xff] %vm1107, %v901
    %1121 = vst.msk [vmem:[%s5 + $0x68] sm:$0xff] %vm1107, %v904
    %1122 = vst.msk [vmem:[%s5 + $0x70] sm:$0xff] %vm1107, %v909
    %1123 = vst.msk [vmem:[%s5 + $0x78] sm:$0xff] %vm1107, %v912
    %1124 = vst.msk [vmem:[%s5 + $0x80] sm:$0xff] %vm1107, %v917
    %1125 = vst.msk [vmem:[%s5 + $0x88] sm:$0xff] %vm1107, %v920
    %1126 = vst.msk [vmem:[%s5 + $0x90] sm:$0xff] %vm1107, %v925
    %1127 = vst.msk [vmem:[%s5 + $0x98] sm:$0xff] %vm1107, %v928
    %1128 = vst.msk [vmem:[%s5 + $0xa0] sm:$0xff] %vm1107, %v933
    %1129 = vst.msk [vmem:[%s5 + $0xa8] sm:$0xff] %vm1107, %v936
    %1130 = vst.msk [vmem:[%s5 + $0xb0] sm:$0xff] %vm1107, %v941
    %1131 = vst.msk [vmem:[%s5 + $0xb8] sm:$0xff] %vm1107, %v944
    %1132 = vst.msk [vmem:[%s5 + $0xc0] sm:$0xff] %vm1107, %v949
    %1133 = vst.msk [vmem:[%s5 + $0xc8] sm:$0xff] %vm1107, %v952
    %1134 = vst.msk [vmem:[%s5 + $0xd0] sm:$0xff] %vm1107, %v957
    %1135 = vst.msk [vmem:[%s5 + $0xd8] sm:$0xff] %vm1107, %v960
    %1136 = vst.msk [vmem:[%s5 + $0xe0] sm:$0xff] %vm1107, %v965
    %1137 = vst.msk [vmem:[%s5 + $0xe8] sm:$0xff] %vm1107, %v968
    %1138 = vst.msk [vmem:[%s5 + $0xf0] sm:$0xff] %vm1107, %v973
    %1139 = vst.msk [vmem:[%s5 + $0xf8] sm:$0xff] %vm1107, %v976
    %1140 = vst.msk [vmem:[%s5 + $0x100] sm:$0xff] %vm1107, %v981
    %1141 = vst.msk [vmem:[%s5 + $0x108] sm:$0xff] %vm1107, %v984
    %1142 = vst.msk [vmem:[%s5 + $0x110] sm:$0xff] %vm1107, %v989
    %1143 = vst.msk [vmem:[%s5 + $0x118] sm:$0xff] %vm1107, %v992
    %1144 = vst.msk [vmem:[%s5 + $0x120] sm:$0xff] %vm1107, %v997
    %1145 = vst.msk [vmem:[%s5 + $0x128] sm:$0xff] %vm1107, %v1000
    %1146 = vst.msk [vmem:[%s5 + $0x130] sm:$0xff] %vm1107, %v1005
    %1147 = vst.msk [vmem:[%s5 + $0x138] sm:$0xff] %vm1107, %v1008
    %1148 = vst.msk [vmem:[%s5 + $0x140] sm:$0xff] %vm1107, %v1013
    %1149 = vst.msk [vmem:[%s5 + $0x148] sm:$0xff] %vm1107, %v1016
    %1150 = vst.msk [vmem:[%s5 + $0x150] sm:$0xff] %vm1107, %v1021
    %1151 = vst.msk [vmem:[%s5 + $0x158] sm:$0xff] %vm1107, %v1024
    %1152 = vst.msk [vmem:[%s5 + $0x160] sm:$0xff] %vm1107, %v1029
    %1153 = vst.msk [vmem:[%s5 + $0x168] sm:$0xff] %vm1107, %v1032
    %1154 = vst.msk [vmem:[%s5 + $0x170] sm:$0xff] %vm1107, %v1037
    %1155 = vst.msk [vmem:[%s5 + $0x178] sm:$0xff] %vm1107, %v1040
    %1156 = vst.msk [vmem:[%s5 + $0x180] sm:$0xff] %vm1107, %v1045
    %1157 = vst.msk [vmem:[%s5 + $0x188] sm:$0xff] %vm1107, %v1048
    %1158 = vst.msk [vmem:[%s5 + $0x190] sm:$0xff] %vm1107, %v1053
    %1159 = vst.msk [vmem:[%s5 + $0x198] sm:$0xff] %vm1107, %v1056
    %1160 = vst.msk [vmem:[%s5 + $0x1a0] sm:$0xff] %vm1107, %v1061
    %1161 = vst.msk [vmem:[%s5 + $0x1a8] sm:$0xff] %vm1107, %v1064
    %1162 = vst.msk [vmem:[%s5 + $0x1b0] sm:$0xff] %vm1107, %v1069
    %1163 = vst.msk [vmem:[%s5 + $0x1b8] sm:$0xff] %vm1107, %v1072
    %1164 = vst.msk [vmem:[%s5 + $0x1c0] sm:$0xff] %vm1107, %v1077
    %1165 = vst.msk [vmem:[%s5 + $0x1c8] sm:$0xff] %vm1107, %v1080
    %1166 = vst.msk [vmem:[%s5 + $0x1d0] sm:$0xff] %vm1107, %v1085
    %1167 = vst.msk [vmem:[%s5 + $0x1d8] sm:$0xff] %vm1107, %v1088
    %1168 = vst.msk [vmem:[%s5 + $0x1e0] sm:$0xff] %vm1107, %v1093
    %1169 = vst.msk [vmem:[%s5 + $0x1e8] sm:$0xff] %vm1107, %v1096
    %1170 = vst.msk [vmem:[%s5 + $0x1f0] sm:$0xff] %vm1107, %v1101
    %1171 = vst.msk [vmem:[%s5 + $0x1f8] sm:$0xff] %vm1107, %v1104
    // Predicated region
    $region26: #{tpu_custom_call.1} parent=1 // pred_check
      _
    $region27: #{tpu_custom_call.1} parent=1 // pred_check_branch
      %1173 = sbr.rel (0) target = $region29
    $region28: #{tpu_custom_call.1} parent=1 // pred_region
      _
    $region29: #{tpu_custom_call.1} parent=1 // pred_fallthru
      _
    // Predicated region
    $region30: #{tpu_custom_call.1} parent=1 // pred_check
      _
    $region31: #{tpu_custom_call.1} parent=1 // pred_check_branch
      %1175 = sbr.rel (0) target = $region33
    $region32: #{tpu_custom_call.1} parent=1 // pred_region
      _
    $region33: #{tpu_custom_call.1} parent=1 // pred_fallthru
      _
    %1176 = vsyncpa [#allocation3], 1

</llo_original>
